<compile_context>
chip_gen: v7x
topology: tpu7x:2x2x1
jax: 0.10.0
libtpu: 0.0.40
codegen_flags: <defaults>
</compile_context>

<pallas_src>
import functools
import math

import jax
import jax.numpy as jnp
from jax.experimental import pallas as pl
from jax.experimental.pallas import tpu as pltpu


def _round_up(x, m):
    return ((x + m - 1) // m) * m


@functools.lru_cache(maxsize=1)
def _tpu_budget():
    """(vmem_limit_bytes, tm_cap, tn_cap) derived per TPU generation."""
    vmem_bytes = None
    try:
        info = pltpu.get_tpu_info()
        vmem_bytes = getattr(info, "vmem_capacity_bytes", None)
    except Exception:
        vmem_bytes = None
    if not vmem_bytes:
        vmem_bytes = 64 * 1024 * 1024  # conservative (v7x per-TC)
    if vmem_bytes >= 100 * 1024 * 1024:
        # v5e / v6e: 128 MiB physical VMEM -> big tiles, fewer weight re-streams.
        return 96 * 1024 * 1024, 512, 512
    # v7x (64 MiB per TC) / unknown: re-derived, smaller budget.
    return 40 * 1024 * 1024, 256, 256


# ------------------------------------------------------------ LayerNorm kernel

def _layernorm_kernel(x_ref, g_ref, b_ref, o_ref, *, eps):
    x = x_ref[...].astype(jnp.float32)
    mean = jnp.mean(x, axis=-1, keepdims=True)
    xc = x - mean
    var = jnp.mean(xc * xc, axis=-1, keepdims=True)
    y = (xc * jax.lax.rsqrt(var + eps) * g_ref[...].astype(jnp.float32)
         + b_ref[...].astype(jnp.float32))
    o_ref[...] = y.astype(o_ref.dtype)


def layernorm(x, gamma, beta, *, eps=1e-5, out_dtype=None):
    """Row-wise LayerNorm over the last dim. x: (M, K)."""
    M, K = x.shape
    out_dtype = out_dtype or x.dtype
    vmem_limit, tm_cap, _ = _tpu_budget()
    tm = min(tm_cap, _round_up(M, 16))
    Mp = _round_up(M, tm)
    xp = x if Mp == M else jnp.pad(x, ((0, Mp - M), (0, 0)))

    out = pl.pallas_call(
        functools.partial(_layernorm_kernel, eps=eps),
        out_shape=jax.ShapeDtypeStruct((Mp, K), out_dtype),
        grid=(Mp // tm,),
        in_specs=[pl.BlockSpec((tm, K), lambda i: (i, 0)),
                  pl.BlockSpec((1, K), lambda i: (0, 0)),
                  pl.BlockSpec((1, K), lambda i: (0, 0))],
        out_specs=pl.BlockSpec((tm, K), lambda i: (i, 0)),
        compiler_params=pltpu.CompilerParams(
            dimension_semantics=("parallel",),
            vmem_limit_bytes=vmem_limit),
    )(xp, gamma.reshape(1, K), beta.reshape(1, K))
    return out[:M] if Mp != M else out


# --------------------------------------------------------- tiled matmul kernel

def _matmul_kernel(*refs, activation, has_res):
    if has_res:
        x_ref, w_ref, b_ref, r_ref, o_ref, acc_ref = refs
    else:
        x_ref, w_ref, b_ref, o_ref, acc_ref = refs
        r_ref = None

    k = pl.program_id(2)

    @pl.when(k == 0)
    def _():
        acc_ref[...] = jnp.zeros_like(acc_ref)

    acc_ref[...] += jnp.dot(x_ref[...], w_ref[...],
                            preferred_element_type=jnp.float32)

    @pl.when(k == pl.num_programs(2) - 1)
    def _():
        y = acc_ref[...] + b_ref[...].astype(jnp.float32)
        if activation == "gelu":
            y = jax.nn.gelu(y, approximate=False)  # torch.nn.GELU default
        if has_res:
            y = y + r_ref[...].astype(jnp.float32)
        o_ref[...] = y.astype(o_ref.dtype)


def fused_linear(x, w, b, *, residual=None, activation=None, out_dtype=None,
                 tk_cap=512):
    """y = [residual +] [gelu]( x @ w + b ).

    x: (M, K), w: (K, N), b: (N,), residual: (M, N).
    M/N/K are zero-padded to tile-aligned sizes; result is trimmed back.
    """
    M, K = x.shape
    K2, N = w.shape
    assert K == K2
    out_dtype = out_dtype or x.dtype
    has_res = residual is not None
    vmem_limit, tm_cap, tn_cap = _tpu_budget()

    tm = min(tm_cap, _round_up(M, 16))    # 16-row alignment for bf16 tiles
    tn = min(tn_cap, _round_up(N, 128))
    tk = min(tk_cap, _round_up(K, 128))
    Mp, Np, Kp = _round_up(M, tm), _round_up(N, tn), _round_up(K, tk)

    xp = x if (Mp == M and Kp == K) else jnp.pad(x, ((0, Mp - M), (0, Kp - K)))
    wp = w if (Kp == K and Np == N) else jnp.pad(w, ((0, Kp - K), (0, Np - N)))
    bp = b if Np == N else jnp.pad(b, ((0, Np - N),))
    inputs = [xp, wp, bp.reshape(1, Np)]

    in_specs = [
        pl.BlockSpec((tm, tk), lambda i, j, k: (i, k)),
        # TODO(synk): consider pipeline_mode=pl.Buffered(3) here on v5e.
        pl.BlockSpec((tk, tn), lambda i, j, k: (k, j)),
        pl.BlockSpec((1, tn), lambda i, j, k: (0, j)),
    ]
    if has_res:
        rp = residual
        if Mp != M or Np != N:
            rp = jnp.pad(residual, ((0, Mp - M), (0, Np - N)))
        in_specs.append(pl.BlockSpec((tm, tn), lambda i, j, k: (i, j)))
        inputs.append(rp)

    out = pl.pallas_call(
        functools.partial(_matmul_kernel, activation=activation,
                          has_res=has_res),
        out_shape=jax.ShapeDtypeStruct((Mp, Np), out_dtype),
        grid_spec=pltpu.PrefetchScalarGridSpec(
            num_scalar_prefetch=0,
            grid=(Mp // tm, Np // tn, Kp // tk),
            in_specs=in_specs,
            out_specs=pl.BlockSpec((tm, tn), lambda i, j, k: (i, j)),
            scratch_shapes=[pltpu.VMEM((tm, tn), jnp.float32)]),
        compiler_params=pltpu.CompilerParams(
            dimension_semantics=("parallel", "parallel", "arbitrary"),
            vmem_limit_bytes=vmem_limit),
    )(*inputs)

    if Mp != M or Np != N:
        out = out[:M, :N]
    return out


# ----------------------------------------------------------- attention kernel

def _attn_head_kernel(q_ref, k_ref, v_ref, o_ref, *, scale):
    # Blocks are (1, 1, L, Dh): one (batch, head) per grid step, delivered by DMA.
    q = q_ref[0, 0]                      # (L, Dh) bf16
    k = k_ref[0, 0]
    v = v_ref[0, 0]
    # q @ k^T without an explicit transpose: contract last dim vs last dim.
    s = jax.lax.dot_general(q, k, (((1,), (1,)), ((), ())),
                            preferred_element_type=jnp.float32)
    s = s * jnp.float32(scale)
    L = s.shape[0]
    row = jax.lax.broadcasted_iota(jnp.int32, (L, L), 0)
    col = jax.lax.broadcasted_iota(jnp.int32, (L, L), 1)
    s = jnp.where(col <= row, s, jnp.float32(-1e30))
    m = jnp.max(s, axis=-1, keepdims=True)
    p = jnp.exp(s - m)                   # masked entries underflow to exactly 0
    denom = jnp.sum(p, axis=-1, keepdims=True)
    p = p * pl.reciprocal(denom, approx=True)   # EUP slot, off the VPU path
    o = jnp.dot(p.astype(v.dtype), v, preferred_element_type=jnp.float32)
    o_ref[0, 0] = o.astype(o_ref.dtype)  # direct per-head store, no concat


def nsa_attention(q, k, v):
    """q/k/v: (B, H, L, Dh) -> (B, H, L, Dh). One (batch, head) per grid step."""
    B, H, L, Dh = q.shape
    scale = 1.0 / math.sqrt(Dh)
    vmem_limit, _, _ = _tpu_budget()
    spec = pl.BlockSpec((1, 1, L, Dh), lambda b, h: (b, h, 0, 0))
    return pl.pallas_call(
        functools.partial(_attn_head_kernel, scale=scale),
        out_shape=jax.ShapeDtypeStruct((B, H, L, Dh), q.dtype),
        grid=(B, H),
        in_specs=[spec, spec, spec],
        out_specs=spec,
        compiler_params=pltpu.CompilerParams(
            dimension_semantics=("parallel", "parallel"),
            vmem_limit_bytes=vmem_limit),
    )(q, k, v)


# ------------------------------------------------------------- model (glue)

def init_params(key, vocab_size, num_layers, hidden_dim, num_heads, head_dim,
                max_seq_len=1024):
    D = hidden_dim
    inner = num_heads * head_dim
    ks = iter(jax.random.split(key, 4 + 8 * num_layers))

    def w_init(k, shape, scale=0.02, dtype=jnp.bfloat16):
        return (scale * jax.random.normal(k, shape)).astype(dtype)

    params = {
        "embedding": jax.random.normal(next(ks), (vocab_size, D)).astype(jnp.float32),
        "pos_embedding": (jax.random.normal(next(ks), (1, max_seq_len, D))
                          / math.sqrt(D)).astype(jnp.float32),
        "norm_g": jnp.ones((D,), jnp.float32),
        "norm_b": jnp.zeros((D,), jnp.float32),
        "head_w": w_init(next(ks), (D, vocab_size)),
        "head_b": jnp.zeros((vocab_size,), jnp.float32),
        "num_heads": num_heads,
        "head_dim": head_dim,
        "layers": [],
    }
    for _ in range(num_layers):
        layer = {
            "ln1_g": jnp.ones((D,), jnp.float32),
            "ln1_b": jnp.zeros((D,), jnp.float32),
            "ln2_g": jnp.ones((D,), jnp.float32),
            "ln2_b": jnp.zeros((D,), jnp.float32),
            # q/k/v projections fused into one (D, 3*inner) weight.
            "qkv_w": w_init(next(ks), (D, 3 * inner)),
            "qkv_b": jnp.zeros((3 * inner,), jnp.float32),
            "o_w": w_init(next(ks), (inner, D)),
            "o_b": jnp.zeros((D,), jnp.float32),
            "fc1_w": w_init(next(ks), (D, 4 * D)),
            "fc1_b": jnp.zeros((4 * D,), jnp.float32),
            "fc2_w": w_init(next(ks), (4 * D, D)),
            "fc2_b": jnp.zeros((D,), jnp.float32),
        }
        params["layers"].append(layer)
    return params


def block_forward(p, layer, x2d, B, L):
    H, Dh = p["num_heads"], p["head_dim"]
    inner = H * Dh
    # LN1 (standalone memory-bound kernel) then one combined QKV matmul.
    n1 = layernorm(x2d, layer["ln1_g"], layer["ln1_b"])
    qkv = fused_linear(n1, layer["qkv_w"], layer["qkv_b"])         # (B*L, 3*inner)
    # Head split as wrapper-side layout plumbing (XLA transposes) so the
    # attention kernel receives lane-contiguous per-head (L, Dh) blocks via DMA.
    qkv5 = qkv.reshape(B, L, 3, H, Dh)
    q = jnp.transpose(qkv5[:, :, 0], (0, 2, 1, 3))                 # (B, H, L, Dh)
    k = jnp.transpose(qkv5[:, :, 1], (0, 2, 1, 3))
    v = jnp.transpose(qkv5[:, :, 2], (0, 2, 1, 3))
    attn = nsa_attention(q, k, v)                                  # (B, H, L, Dh)
    attn2d = jnp.transpose(attn, (0, 2, 1, 3)).reshape(B * L, inner)
    # o-projection with the residual add fused into its epilogue.
    x2d = fused_linear(attn2d, layer["o_w"], layer["o_b"], residual=x2d)
    # LN2 then fc1 (+GELU); residual fused into fc2.
    n2 = layernorm(x2d, layer["ln2_g"], layer["ln2_b"])
    m = fused_linear(n2, layer["fc1_w"], layer["fc1_b"], activation="gelu")
    x2d = fused_linear(m, layer["fc2_w"], layer["fc2_b"], residual=x2d)
    return x2d


def nsa_transformer_forward(params, tokens):
    B, L = tokens.shape
    D = params["embedding"].shape[1]
    # Embedding gather + positional add in XLA (data-dependent gather).
    h = params["embedding"][tokens] + params["pos_embedding"][:, :L]
    x2d = h.reshape(B * L, D).astype(jnp.bfloat16)
    for layer in params["layers"]:
        x2d = block_forward(params, layer, x2d, B, L)
    # Final LayerNorm then LM head; logits emitted in f32.
    n = layernorm(x2d, params["norm_g"], params["norm_b"])
    logits = fused_linear(n, params["head_w"], params["head_b"],
                          out_dtype=jnp.float32)
    return logits.reshape(B, L, -1)


# -------------------------------------------------------------------- main

if __name__ == "__main__":
    vocab_size = 32
    num_layers = 2
    hidden_dim = 32
    num_heads = 4
    head_dim = 8
    B, L = 2, 8

    key = jax.random.PRNGKey(0)
    pkey, tkey = jax.random.split(key)
    params = init_params(pkey, vocab_size, num_layers, hidden_dim,
                         num_heads, head_dim)
    tokens = jax.random.randint(tkey, (B, L), 0, vocab_size, dtype=jnp.int32)

    logits = nsa_transformer_forward(params, tokens)
    jax.block_until_ready(logits)
    assert logits.shape == (B, L, vocab_size)
    assert bool(jnp.all(jnp.isfinite(logits)))
    print("KERNEL_OK")
</pallas_src>

<mosaic_0001>
module attributes {stable_mosaic.version = 11 : i64} {
  func.func @_layernorm_kernel(%arg0: i32, %arg1: memref<16x32xbf16, #tpu.memory_space<vmem>>, %arg2: memref<1x32xf32, #tpu.memory_space<vmem>>, %arg3: memref<1x32xf32, #tpu.memory_space<vmem>>, %arg4: memref<16x32xbf16, #tpu.memory_space<vmem>>) attributes {dimension_semantics = [#tpu.dimension_semantics<parallel>], iteration_bounds = array<i64: 1>, scalar_prefetch = 0 : i64, scratch_operands = 0 : i64, tpu.core_type = #tpu.core_type<tc>, window_params = [{transform_indices = @transform_0, window_bounds = array<i64: 16, 32>}, {pipeline_mode = #tpu.pipeline_mode<synchronous>, transform_indices = @transform_1, window_bounds = array<i64: 1, 32>}, {pipeline_mode = #tpu.pipeline_mode<synchronous>, transform_indices = @transform_2, window_bounds = array<i64: 1, 32>}, {transform_indices = @transform_3, window_bounds = array<i64: 16, 32>}]} {
    %c0 = arith.constant 0 : index
    %c0_0 = arith.constant 0 : index
    %0 = vector.load %arg1[%c0, %c0_0] : memref<16x32xbf16, #tpu.memory_space<vmem>>, vector<16x32xbf16>
    %1 = arith.extf %0 : vector<16x32xbf16> to vector<16x32xf32>
    %cst = arith.constant dense<0.000000e+00> : vector<16xf32>
    %2 = vector.multi_reduction <add>, %1, %cst [1] : vector<16x32xf32> to vector<16xf32>
    %3 = vector.shape_cast %2 : vector<16xf32> to vector<16x1xf32>
    %cst_1 = arith.constant 3.200000e+01 : f32
    %4 = vector.broadcast %cst_1 : f32 to vector<16x1xf32>
    %5 = arith.divf %3, %4 : vector<16x1xf32>
    %6 = vector.broadcast %5 : vector<16x1xf32> to vector<16x32xf32>
    %7 = arith.subf %1, %6 : vector<16x32xf32>
    %8 = arith.mulf %7, %7 : vector<16x32xf32>
    %cst_2 = arith.constant dense<0.000000e+00> : vector<16xf32>
    %9 = vector.multi_reduction <add>, %8, %cst_2 [1] : vector<16x32xf32> to vector<16xf32>
    %10 = vector.shape_cast %9 : vector<16xf32> to vector<16x1xf32>
    %cst_3 = arith.constant 3.200000e+01 : f32
    %11 = vector.broadcast %cst_3 : f32 to vector<16x1xf32>
    %12 = arith.divf %10, %11 : vector<16x1xf32>
    %cst_4 = arith.constant 9.99999974E-6 : f32
    %13 = vector.broadcast %cst_4 : f32 to vector<16x1xf32>
    %14 = arith.addf %12, %13 : vector<16x1xf32>
    %15 = math.rsqrt %14 : vector<16x1xf32>
    %16 = vector.broadcast %15 : vector<16x1xf32> to vector<16x32xf32>
    %17 = arith.mulf %7, %16 : vector<16x32xf32>
    %c0_5 = arith.constant 0 : index
    %c0_6 = arith.constant 0 : index
    %18 = vector.load %arg2[%c0_5, %c0_6] : memref<1x32xf32, #tpu.memory_space<vmem>>, vector<1x32xf32>
    %19 = vector.broadcast %18 : vector<1x32xf32> to vector<16x32xf32>
    %20 = arith.mulf %17, %19 : vector<16x32xf32>
    %c0_7 = arith.constant 0 : index
    %c0_8 = arith.constant 0 : index
    %21 = vector.load %arg3[%c0_7, %c0_8] : memref<1x32xf32, #tpu.memory_space<vmem>>, vector<1x32xf32>
    %22 = vector.broadcast %21 : vector<1x32xf32> to vector<16x32xf32>
    %23 = arith.addf %20, %22 : vector<16x32xf32>
    %24 = arith.truncf %23 : vector<16x32xf32> to vector<16x32xbf16>
    %c0_9 = arith.constant 0 : index
    %c0_10 = arith.constant 0 : index
    %25 = vector.load %arg4[%c0_9, %c0_10] : memref<16x32xbf16, #tpu.memory_space<vmem>>, vector<16x32xbf16>
    tpu.vector_store %arg4[%c0_9, %c0_10], %24 {strides = array<i32>} : memref<16x32xbf16, #tpu.memory_space<vmem>>, vector<16x32xbf16>,
    return
  }
  func.func @transform_0(%arg0: i32) -> (i32, i32) {
    %c0_i32 = arith.constant 0 : i32
    %c0_i32_0 = arith.constant 0 : i32
    return %arg0, %c0_i32 : i32, i32
  }
  func.func @transform_1(%arg0: i32) -> (i32, i32) {
    %c0_i32 = arith.constant 0 : i32
    %c0_i32_0 = arith.constant 0 : i32
    %c0_i32_1 = arith.constant 0 : i32
    return %c0_i32, %c0_i32_0 : i32, i32
  }
  func.func @transform_2(%arg0: i32) -> (i32, i32) {
    %c0_i32 = arith.constant 0 : i32
    %c0_i32_0 = arith.constant 0 : i32
    %c0_i32_1 = arith.constant 0 : i32
    return %c0_i32, %c0_i32_0 : i32, i32
  }
  func.func @transform_3(%arg0: i32) -> (i32, i32) {
    %c0_i32 = arith.constant 0 : i32
    %c0_i32_0 = arith.constant 0 : i32
    return %arg0, %c0_i32 : i32, i32
  }
}

</mosaic_0001>

<llo_original>
// kernel: tpu_custom_call.1
$region0: #{tpu_custom_call.1}
  #allocation0 [shape = 'u32[]', space=smem, size = 0x4, offset = 0x4, fixed_abs, tag = 'smem constant byte address 0x4 - core index']
  #allocation1 [shape = 'u32[144,128]{1,0:T(1,128)}', space=vmem, size = 0x12000, scoped, tag = 'internal scratch']
  %s0 = inlined_call_operand.hbm [shape: bf16[16,32], index: 0, kind: input, shape index: {}]
  %s1 = inlined_call_operand.vmem [shape: f32[1,32], index: 1, kind: input, shape index: {}]
  %s2 = inlined_call_operand.vmem [shape: f32[1,32], index: 2, kind: input, shape index: {}]
  %s3 = inlined_call_operand.hbm [shape: bf16[16,32], index: 3, kind: output, shape index: {}]
  %s4 = sld [smem:[#allocation0]]
  $region26: #{tpu_custom_call.1} parent=0
    _
  %s6 = ssub.s32 1, %s4
  %s7 = scalar_select 0, %s6, %s4
  $region1: #{tpu_custom_call.1} parent=0
    #allocation2 [shape = 'u8[4096]{0}', space=vmem, size = 0x1000, scoped, tag = 'input window, operand 0, single buffered']
    #allocation3 [shape = 's32[1]{0}', space=sflag, size = 0x4, scoped, tag = 'scoped memory for tpu_custom_call.1']
    #allocation4 [shape = 's32[1]{0}', space=sflag, size = 0x4, scoped, tag = 'scoped memory for tpu_custom_call.1']
    #allocation5 [shape = 'u8[4096]{0}', space=vmem, size = 0x1000, scoped, tag = 'output window, operand 0, single buffered']
    %8 = vsyncpa [#allocation3], 0
    %9 = vsyncpa [#allocation4], 0
    // Predicated region
    $region2: #{tpu_custom_call.1} parent=1 // pred_check
      _
    $region3: #{tpu_custom_call.1} parent=1 // pred_check_branch
      %11 = sbr.rel (0) target = $region5
    $region4: #{tpu_custom_call.1} parent=1 // pred_region
      %s13 = ssub.s32 128, 128
      %14 = vsyncadd [#allocation3], %s13
      %s15 = sshll.u32 [#allocation2], 4
      %s16 = int_to_ptr.vmem [resolvable:$true] %s15
      %21 = dma.hbm_to_vmem [thread:$0]  %s0, 128, %s16, [#allocation3], 64, 64, 4
    $region5: #{tpu_custom_call.1} parent=1 // pred_fallthru
      _
    // Predicated region
    $region6: #{tpu_custom_call.1} parent=1 // pred_check
      _
    $region7: #{tpu_custom_call.1} parent=1 // pred_check_branch
      %23 = sbr.rel (0) target = $region9
    $region8: #{tpu_custom_call.1} parent=1 // pred_region
      _
    $region9: #{tpu_custom_call.1} parent=1 // pred_fallthru
      _
    // Predicated region
    $region10: #{tpu_custom_call.1} parent=1 // pred_check
      _
    $region11: #{tpu_custom_call.1} parent=1 // pred_check_branch
      %25 = sbr.rel (0) target = $region13
    $region12: #{tpu_custom_call.1} parent=1 // pred_region
      _
    $region13: #{tpu_custom_call.1} parent=1 // pred_fallthru
      _
    // Predicated region
    $region14: #{tpu_custom_call.1} parent=1 // pred_check
      _
    $region15: #{tpu_custom_call.1} parent=1 // pred_check_branch
      %27 = sbr.rel (0) target = $region17
    $region16: #{tpu_custom_call.1} parent=1 // pred_region
      %28 = dma.done [#allocation3], 128
    $region17: #{tpu_custom_call.1} parent=1 // pred_fallthru
      _
    %v29 = vld [vmem:[#allocation2] sm:$0xf]
    %v30 = vld [vmem:[#allocation2 + $0x4] sm:$0xf]
    %v31 = vunpack.c.l.bf16 %v29
    %v32 = vunpack.c.l.bf16 %v30
    %vm33 = vcmask 261120
    %v34 = vsel %vm33, %v31, 0.0
    %35 = vadd.xlane.f32.xlu0 %v34
    %v36 = vpop.xlane.xlu0 %35
    %v37 = vsel %vm33, %v32, 0.0
    %38 = vadd.xlane.f32.xlu0 %v37
    %v39 = vpop.xlane.xlu0 %38
    %v40 = vrcp.pop 32.0
    %v41 = vmul.f32 %v36, %v40
    %v42 = vmul.f32 %v39, %v40
    %v43 = vsub.f32 %v31, %v41
    %v44 = vsub.f32 %v32, %v42
    %v45 = vmul.f32 %v43, %v43
    %v46 = vmul.f32 %v44, %v44
    %v47 = vsel %vm33, %v45, 0.0
    %48 = vadd.xlane.f32.xlu0 %v47
    %v49 = vpop.xlane.xlu0 %48
    %v50 = vsel %vm33, %v46, 0.0
    %51 = vadd.xlane.f32.xlu0 %v50
    %v52 = vpop.xlane.xlu0 %51
    %v53 = vmul.f32 %v49, %v40
    %v54 = vmul.f32 %v52, %v40
    %v55 = vadd.f32 %v53, 1e-05
    %v56 = vadd.f32 %v54, 1e-05
    %v57 = vrsqrt.pop %v55
    %v58 = vrsqrt.pop %v56
    %v59 = vmul.f32 %v43, %v57
    %v60 = vmul.f32 %v44, %v58
    %v61 = vld [vmem:[%s1] sm:$0x1]
    %v63 = vlaneseq
    %v64 = vshrl.u32 %v63, 7
    %v65 = vsub.s32 0, %v64
    %v66 = vrot.slane %v61, %v65
    %v68 = vmul.f32 %v59, %v66
    %v69 = vmul.f32 %v60, %v66
    %v70 = vld [vmem:[%s2] sm:$0x1]
    %v72 = vlaneseq
    %v73 = vshrl.u32 %v72, 7
    %v74 = vsub.s32 0, %v73
    %v75 = vrot.slane %v70, %v74
    %v77 = vadd.f32 %v68, %v75
    %v78 = vadd.f32 %v69, %v75
    %v79 = vpack.c.bf16 %v78, %v77
    %v81 = vunpack.c.l.b16 %v79
    %v82 = vunpack.c.h.b16 %v79
    %v83 = vpack.c.b16 %v81, %v81
    %v84 = vpack.c.b16 %v82, %v82
    %vm87 = vcmask 257024
    %88 = vst.msk [vmem:[#allocation5] sm:$0xf] %vm87, %v83
    %89 = vst.msk [vmem:[#allocation5 + $0x4] sm:$0xf] %vm87, %v84
    // Predicated region
    $region18: #{tpu_custom_call.1} parent=1 // pred_check
      _
    $region19: #{tpu_custom_call.1} parent=1 // pred_check_branch
      %91 = sbr.rel (0) target = $region21
    $region20: #{tpu_custom_call.1} parent=1 // pred_region
      %s93 = ssub.s32 128, 128
      %94 = vsyncadd [#allocation4], %s93
      %s95 = sshll.u32 [#allocation5], 4
      %s96 = int_to_ptr.vmem [resolvable:$true] %s95
      %101 = dma.vmem_to_hbm [thread:$0]  %s96, 128, %s3, [#allocation4], 64, 64, 4
    $region21: #{tpu_custom_call.1} parent=1 // pred_fallthru
      _
    // Predicated region
    $region22: #{tpu_custom_call.1} parent=1 // pred_check
      _
    $region23: #{tpu_custom_call.1} parent=1 // pred_check_branch
      %103 = sbr.rel (0) target = $region25
    $region24: #{tpu_custom_call.1} parent=1 // pred_region
      %104 = dma.done [#allocation4], 128
    $region25: #{tpu_custom_call.1} parent=1 // pred_fallthru
      _
    %105 = vsyncpa [#allocation3], 1
    %106 = vsyncpa [#allocation4], 1

</llo_original>
